<compile_context>
chip_gen: v7x
topology: tpu7x:2x2x1
jax: 0.10.0
libtpu: 0.0.40
codegen_flags: <defaults>
</compile_context>

<pallas_src>
import functools

import jax
import jax.numpy as jnp
from jax.experimental import pallas as pl
from jax.experimental.pallas import tpu as pltpu


def _grad_loss_kernel(mask_x_ref, mask_y_ref, p_ref, g_ref, out_ref, *,
                      rows, blk, chunk, HW_pad, W, compute_dtype,
                      needs_row_mask):
    """One (blk, HW_pad) block of flattened planes -> (8, 128) partial sum."""
    nchunks = blk // chunk
    row0 = pl.program_id(0) * blk

    # Hoisted once per grid step (closure-captured by the fori_loop body),
    # instead of a per-step full-size iota + mod + compares.
    mask_x = jnp.broadcast_to(mask_x_ref[...].astype(compute_dtype),
                              (chunk, HW_pad))
    mask_y = jnp.broadcast_to(mask_y_ref[...].astype(compute_dtype),
                              (chunk, HW_pad))

    def body(c, acc):
        off = pl.multiple_of(c * chunk, chunk)
        p = p_ref[pl.ds(off, chunk), :].astype(compute_dtype)
        g = g_ref[pl.ds(off, chunk), :].astype(compute_dtype)

        # dx neighbour x[flat+1] (zeroed past the last column / lane padding),
        # dy neighbour x[flat+W] (zeroed past the last row / lane padding).
        p_r = pltpu.roll(p, shift=HW_pad - 1, axis=1) * mask_x
        g_r = pltpu.roll(g, shift=HW_pad - 1, axis=1) * mask_x
        p_d = pltpu.roll(p, shift=HW_pad - W, axis=1) * mask_y
        g_d = pltpu.roll(g, shift=HW_pad - W, axis=1) * mask_y

        # kernel_x = [-1, 1]  -> |x[w+1] - x[w]|
        # kernel_y = [-1,-1]  -> |-(x[h] + x[h+1])| == |x[h] + x[h+1]|
        term = (jnp.abs(jnp.abs(p_r - p) - jnp.abs(g_r - g))
                + jnp.abs(jnp.abs(p + p_d) - jnp.abs(g + g_d)))

        if needs_row_mask:
            # Ragged last row-block: zero rows beyond the real data.  A select
            # (not a multiply) so uninitialised OOB data (even NaN/Inf) can
            # never propagate into the sum.
            rid = row0 + off + jax.lax.broadcasted_iota(jnp.int32, (chunk, 1), 0)
            term = jnp.where(rid < rows, term, 0.0)

        # Fold (chunk, HW_pad) -> (8, 128) with vreg-aligned slices: pure VPU
        # adds; accumulation is always f32 (even on the bf16 path).  The one
        # cross-lane sum happens once in the wrapper on the tiny partials.
        rowsum = term[0:8, :].astype(jnp.float32)
        for s in range(1, chunk // 8):
            rowsum = rowsum + term[s * 8:(s + 1) * 8, :].astype(jnp.float32)
        part = rowsum[:, 0:128]
        for t in range(1, HW_pad // 128):
            part = part + rowsum[:, t * 128:(t + 1) * 128]
        return acc + part

    acc = jax.lax.fori_loop(0, nchunks, body, jnp.zeros((8, 128), jnp.float32))
    out_ref[...] = acc


def _tpu_vmem_capacity_bytes():
    try:
        return int(getattr(pltpu.get_tpu_info(), "vmem_capacity_bytes",
                           64 * 1024 * 1024))
    except Exception:
        return 64 * 1024 * 1024


def gradient_loss(preds, gts, *, block_budget_bytes=None,
                  vmem_limit_bytes=None, bf16_elementwise=True):
    """preds, gts: (N, C, H, W) arrays. Returns the scalar f32 loss."""
    assert preds.shape == gts.shape
    N, C, H, W = preds.shape
    rows = N * C
    HW = H * W
    HW_pad = pl.cdiv(HW, 128) * 128

    # Generation-aware budgets: v7x has only 64 MiB VMEM per TensorCore, while
    # v5e/v6e have 128 MiB and can amortize per-step overhead with larger DMAs.
    vmem_cap = _tpu_vmem_capacity_bytes()
    small_vmem = vmem_cap <= (64 << 20)
    if vmem_limit_bytes is None:
        vmem_limit_bytes = (44 << 20) if small_vmem else (80 << 20)
    if block_budget_bytes is None:
        block_budget_bytes = (6 << 20) if small_vmem else (12 << 20)

    # bf16 elementwise compute only when the inputs are already bf16 (packed
    # bf16 VPU on v6e/v7x).  Pass bf16_elementwise=False on v5e.
    compute_dtype = (jnp.bfloat16
                     if (preds.dtype == jnp.bfloat16 and bf16_elementwise)
                     else jnp.float32)

    # Lane-dense flat layout; the reshape is free.  Lane-pad only when needed.
    p = preds.reshape(rows, HW)
    g = gts.reshape(rows, HW)
    if HW_pad != HW:
        # TODO(synk): a (rows*H, W_pad) layout with a 1-row halo would avoid
        # this extra HBM copy when W is not a multiple of 128.
        p = jnp.pad(p, ((0, 0), (0, HW_pad - HW)))
        g = jnp.pad(g, ((0, 0), (0, HW_pad - HW)))

    # Neighbour-validity masks, built once (tiny) and kept resident in VMEM.
    j = jnp.arange(HW_pad, dtype=jnp.int32)
    mask_x = ((j % W != W - 1) & (j < HW)).astype(compute_dtype).reshape(1, HW_pad)
    mask_y = (j < (H - 1) * W).astype(compute_dtype).reshape(1, HW_pad)

    itemsize = jnp.dtype(preds.dtype).itemsize
    row_bytes = HW_pad * itemsize
    rows8 = pl.cdiv(rows, 8) * 8

    # chunk: rows per fori_loop iteration -> bounds the compute live-set
    # (~12 chunk-sized f32 intermediates) to ~1.5 MiB.
    chunk = int((3 << 19) // (12 * HW_pad * 4))
    chunk = max(8, min(512, (chunk // 8) * 8, rows8))

    # blk: rows per grid step (DMA block), a multiple of chunk, multi-MiB.
    blk = max(chunk, (int(block_budget_bytes) // row_bytes) // chunk * chunk)
    blk = min(blk, pl.cdiv(rows, chunk) * chunk)

    # v7x: keep >= 8 grid steps (2-TC balance + pipeline depth) when possible.
    min_steps = 8
    if pl.cdiv(rows, blk) < min_steps and rows >= min_steps * chunk:
        blk = pl.cdiv(pl.cdiv(rows, min_steps), chunk) * chunk

    # Static VMEM-footprint check: 2 inputs x 2 pipeline buffers x block plus
    # the chunk compute live-set and resident masks. Shrink instead of spill.
    def _footprint(b, c):
        return (2 * 2 * b * row_bytes          # double-buffered input blocks
                + 12 * c * HW_pad * 4          # chunk compute live-set (f32)
                + 2 * 2 * HW_pad * 4           # resident masks
                + 2 * 8 * 128 * 4)             # output block
    while blk > chunk and _footprint(blk, chunk) > vmem_limit_bytes:
        blk -= chunk
    while chunk > 8 and _footprint(blk, chunk) > vmem_limit_bytes:
        chunk -= 8
        blk = chunk
    if _footprint(blk, chunk) > vmem_limit_bytes:
        # TODO(synk): planes this large need H-tiling with a 1-row halo.
        raise ValueError(
            f"Plane with {HW_pad} padded elements exceeds the VMEM budget of "
            f"{vmem_limit_bytes} bytes; H-tiling is not implemented.")

    num_blocks = pl.cdiv(rows, blk)
    needs_row_mask = (num_blocks * blk != rows)

    kernel = functools.partial(
        _grad_loss_kernel, rows=rows, blk=blk, chunk=chunk, HW_pad=HW_pad,
        W=W, compute_dtype=compute_dtype, needs_row_mask=needs_row_mask)

    partials = pl.pallas_call(
        kernel,
        out_shape=jax.ShapeDtypeStruct((num_blocks * 8, 128), jnp.float32),
        grid_spec=pltpu.PrefetchScalarGridSpec(
            num_scalar_prefetch=0,
            grid=(num_blocks,),
            in_specs=[
                pl.BlockSpec((1, HW_pad), lambda i: (0, 0)),   # mask_x (resident)
                pl.BlockSpec((1, HW_pad), lambda i: (0, 0)),   # mask_y (resident)
                pl.BlockSpec((blk, HW_pad), lambda i: (i, 0)),
                pl.BlockSpec((blk, HW_pad), lambda i: (i, 0)),
            ],
            out_specs=pl.BlockSpec((8, 128), lambda i: (i, 0)),
        ),
        compiler_params=pltpu.CompilerParams(
            dimension_semantics=("parallel",),
            vmem_limit_bytes=int(vmem_limit_bytes),
        ),
    )(mask_x, mask_y, p, g)

    return jnp.sum(partials) / jnp.float32(rows * H * W)


def _reference_loss(preds, gts):
    """Pure-JAX reference mirroring the PyTorch forward."""
    def dx(x):
        xp = jnp.pad(x, ((0, 0), (0, 0), (0, 0), (0, 1)))
        return jnp.abs(xp[..., :, 1:] - xp[..., :, :-1])

    def dy(x):
        xp = jnp.pad(x, ((0, 0), (0, 0), (0, 1), (0, 0)))
        return jnp.abs(-xp[..., :-1, :] - xp[..., 1:, :])

    diff_dx = jnp.abs(dx(preds) - dx(gts))
    diff_dy = jnp.abs(dy(preds) - dy(gts))
    return jnp.mean(diff_dx + diff_dy)


if __name__ == "__main__":
    key = jax.random.PRNGKey(0)
    # Base case, a ragged-rows case (N*C not a multiple of blk/8), and a case
    # with H*W not a multiple of 128 (lane-pad path) per the review.
    shapes = [(2, 4, 16, 16), (2, 3, 16, 16), (1, 2, 10, 12)]
    for shape in shapes:
        key, k1, k2 = jax.random.split(key, 3)
        preds = jax.random.normal(k1, shape, dtype=jnp.float32)
        gts = jax.random.normal(k2, shape, dtype=jnp.float32)
        out = jax.block_until_ready(gradient_loss(preds, gts))
        ref = jax.block_until_ready(_reference_loss(preds, gts))
        assert jnp.allclose(out, ref, rtol=1e-5, atol=1e-5), (shape, out, ref)
    print("KERNEL_OK")
</pallas_src>

<mosaic_0001>
module attributes {stable_mosaic.version = 11 : i64} {
  func.func @_grad_loss_kernel(%arg0: i32, %arg1: memref<1x256xf32, #tpu.memory_space<vmem>>, %arg2: memref<1x256xf32, #tpu.memory_space<vmem>>, %arg3: memref<8x256xf32, #tpu.memory_space<vmem>>, %arg4: memref<8x256xf32, #tpu.memory_space<vmem>>, %arg5: memref<8x128xf32, #tpu.memory_space<vmem>>) attributes {dimension_semantics = [#tpu.dimension_semantics<parallel>], iteration_bounds = array<i64: 1>, scalar_prefetch = 0 : i64, scratch_operands = 0 : i64, tpu.core_type = #tpu.core_type<tc>, window_params = [{pipeline_mode = #tpu.pipeline_mode<synchronous>, transform_indices = @transform_0, window_bounds = array<i64: 1, 256>}, {pipeline_mode = #tpu.pipeline_mode<synchronous>, transform_indices = @transform_1, window_bounds = array<i64: 1, 256>}, {transform_indices = @transform_2, window_bounds = array<i64: 8, 256>}, {transform_indices = @transform_3, window_bounds = array<i64: 8, 256>}, {transform_indices = @transform_4, window_bounds = array<i64: 8, 128>}]} {
    %c0 = arith.constant 0 : index
    %c0_0 = arith.constant 0 : index
    %0 = vector.load %arg1[%c0, %c0_0] : memref<1x256xf32, #tpu.memory_space<vmem>>, vector<1x256xf32>
    %1 = vector.shape_cast %0 : vector<1x256xf32> to vector<1x256xf32>
    %2 = vector.broadcast %1 : vector<1x256xf32> to vector<8x256xf32>
    %c0_1 = arith.constant 0 : index
    %c0_2 = arith.constant 0 : index
    %3 = vector.load %arg2[%c0_1, %c0_2] : memref<1x256xf32, #tpu.memory_space<vmem>>, vector<1x256xf32>
    %4 = vector.shape_cast %3 : vector<1x256xf32> to vector<1x256xf32>
    %5 = vector.broadcast %4 : vector<1x256xf32> to vector<8x256xf32>
    %cst = arith.constant 0.000000e+00 : f32
    %6 = vector.broadcast %cst : f32 to vector<8x128xf32>
    %c0_i32 = arith.constant 0 : i32
    %c8_i32 = arith.constant 8 : i32
    %7 = arith.muli %c0_i32, %c8_i32 : i32
    %8 = tpu.assume_multiple %7, 8 : i32
    %9 = arith.index_cast %8 : i32 to index
    %c0_3 = arith.constant 0 : index
    %10 = vector.load %arg3[%9, %c0_3] : memref<8x256xf32, #tpu.memory_space<vmem>>, vector<8x256xf32>
    %11 = arith.index_cast %8 : i32 to index
    %c0_4 = arith.constant 0 : index
    %12 = vector.load %arg4[%11, %c0_4] : memref<8x256xf32, #tpu.memory_space<vmem>>, vector<8x256xf32>
    %c255_i32 = arith.constant 255 : i32
    %13 = tpu.dynamic_rotate %10 by %c255_i32 dim 1 : vector<8x256xf32>, i32 -> vector<8x256xf32>
    %14 = arith.mulf %13, %2 : vector<8x256xf32>
    %c255_i32_5 = arith.constant 255 : i32
    %15 = tpu.dynamic_rotate %12 by %c255_i32_5 dim 1 : vector<8x256xf32>, i32 -> vector<8x256xf32>
    %16 = arith.mulf %15, %2 : vector<8x256xf32>
    %c240_i32 = arith.constant 240 : i32
    %17 = tpu.dynamic_rotate %10 by %c240_i32 dim 1 : vector<8x256xf32>, i32 -> vector<8x256xf32>
    %18 = arith.mulf %17, %5 : vector<8x256xf32>
    %c240_i32_6 = arith.constant 240 : i32
    %19 = tpu.dynamic_rotate %12 by %c240_i32_6 dim 1 : vector<8x256xf32>, i32 -> vector<8x256xf32>
    %20 = arith.mulf %19, %5 : vector<8x256xf32>
    %21 = arith.subf %14, %10 : vector<8x256xf32>
    %22 = math.absf %21 : vector<8x256xf32>
    %23 = arith.subf %16, %12 : vector<8x256xf32>
    %24 = math.absf %23 : vector<8x256xf32>
    %25 = arith.subf %22, %24 : vector<8x256xf32>
    %26 = math.absf %25 : vector<8x256xf32>
    %27 = arith.addf %10, %18 : vector<8x256xf32>
    %28 = math.absf %27 : vector<8x256xf32>
    %29 = arith.addf %12, %20 : vector<8x256xf32>
    %30 = math.absf %29 : vector<8x256xf32>
    %31 = arith.subf %28, %30 : vector<8x256xf32>
    %32 = math.absf %31 : vector<8x256xf32>
    %33 = arith.addf %26, %32 : vector<8x256xf32>
    %34 = vector.extract_strided_slice %33 {offsets = [0, 0], sizes = [8, 128], strides = [1, 1]} : vector<8x256xf32> to vector<8x128xf32>
    %35 = vector.extract_strided_slice %33 {offsets = [0, 128], sizes = [8, 128], strides = [1, 1]} : vector<8x256xf32> to vector<8x128xf32>
    %36 = arith.addf %34, %35 : vector<8x128xf32>
    %37 = arith.addf %6, %36 : vector<8x128xf32>
    %c1_i32 = arith.constant 1 : i32
    %c0_7 = arith.constant 0 : index
    %c0_8 = arith.constant 0 : index
    %38 = vector.load %arg5[%c0_7, %c0_8] : memref<8x128xf32, #tpu.memory_space<vmem>>, vector<8x128xf32>
    tpu.vector_store %arg5[%c0_7, %c0_8], %37 {strides = array<i32>} : memref<8x128xf32, #tpu.memory_space<vmem>>, vector<8x128xf32>,
    return
  }
  func.func @transform_0(%arg0: i32) -> (i32, i32) {
    %c0_i32 = arith.constant 0 : i32
    %c0_i32_0 = arith.constant 0 : i32
    %c0_i32_1 = arith.constant 0 : i32
    return %c0_i32, %c0_i32_0 : i32, i32
  }
  func.func @transform_1(%arg0: i32) -> (i32, i32) {
    %c0_i32 = arith.constant 0 : i32
    %c0_i32_0 = arith.constant 0 : i32
    %c0_i32_1 = arith.constant 0 : i32
    return %c0_i32, %c0_i32_0 : i32, i32
  }
  func.func @transform_2(%arg0: i32) -> (i32, i32) {
    %c0_i32 = arith.constant 0 : i32
    %c0_i32_0 = arith.constant 0 : i32
    return %arg0, %c0_i32 : i32, i32
  }
  func.func @transform_3(%arg0: i32) -> (i32, i32) {
    %c0_i32 = arith.constant 0 : i32
    %c0_i32_0 = arith.constant 0 : i32
    return %arg0, %c0_i32 : i32, i32
  }
  func.func @transform_4(%arg0: i32) -> (i32, i32) {
    %c0_i32 = arith.constant 0 : i32
    %c0_i32_0 = arith.constant 0 : i32
    return %arg0, %c0_i32 : i32, i32
  }
}

</mosaic_0001>

<llo_original>
// kernel: tpu_custom_call.1
$region0: #{tpu_custom_call.1}
  #allocation0 [shape = 'u32[]', space=smem, size = 0x4, offset = 0x4, fixed_abs, tag = 'smem constant byte address 0x4 - core index']
  #allocation1 [shape = 'u32[144,128]{1,0:T(1,128)}', space=vmem, size = 0x12000, scoped, tag = 'internal scratch']
  %s0 = inlined_call_operand.hbm [shape: f32[1,256], index: 0, kind: input, shape index: {}]
  %s1 = inlined_call_operand.vmem [shape: f32[1,256], index: 1, kind: input, shape index: {}]
  %s2 = inlined_call_operand.hbm [shape: f32[8,256], index: 2, kind: input, shape index: {}]
  %s3 = inlined_call_operand.hbm [shape: f32[8,256], index: 3, kind: input, shape index: {}]
  %s4 = inlined_call_operand.hbm [shape: f32[8,128], index: 4, kind: output, shape index: {}]
  %s5 = sld [smem:[#allocation0]]
  $region38: #{tpu_custom_call.1} parent=0
    _
  %s7 = ssub.s32 1, %s5
  %s8 = scalar_select 0, %s7, %s5
  $region1: #{tpu_custom_call.1} parent=0
    #allocation2 [shape = 'u8[1024]{0}', space=vmem, size = 0x400, scoped, tag = 'input window, operand 0, single buffered']
    #allocation3 [shape = 's32[1]{0}', space=sflag, size = 0x4, scoped, tag = 'scoped memory for tpu_custom_call.1']
    #allocation4 [shape = 's32[1]{0}', space=sflag, size = 0x4, scoped, tag = 'scoped memory for tpu_custom_call.1']
    #allocation5 [shape = 'u8[8192]{0}', space=vmem, size = 0x2000, scoped, tag = 'input window, operand 2, single buffered']
    #allocation6 [shape = 's32[1]{0}', space=sflag, size = 0x4, scoped, tag = 'scoped memory for tpu_custom_call.1']
    #allocation7 [shape = 'u8[8192]{0}', space=vmem, size = 0x2000, scoped, tag = 'input window, operand 3, single buffered']
    #allocation8 [shape = 'u8[4096]{0}', space=vmem, size = 0x1000, scoped, tag = 'output window, operand 0, single buffered']
    %9 = vsyncpa [#allocation3], 0
    %10 = vsyncpa [#allocation6], 0
    %11 = vsyncpa [#allocation4], 0
    // Predicated region
    $region2: #{tpu_custom_call.1} parent=1 // pred_check
      _
    $region3: #{tpu_custom_call.1} parent=1 // pred_check_branch
      %13 = sbr.rel (0) target = $region5
    $region4: #{tpu_custom_call.1} parent=1 // pred_region
      %s15 = ssub.s32 32, 32
      %16 = vsyncadd [#allocation3], %s15
      %s18 = sshll.u32 [#allocation2], 4
      %s19 = int_to_ptr.vmem [resolvable:$true] %s18
      %21 = dma.hbm_to_vmem [thread:$0]  %s0, 32, %s19, [#allocation3]
    $region5: #{tpu_custom_call.1} parent=1 // pred_fallthru
      _
    // Predicated region
    $region6: #{tpu_custom_call.1} parent=1 // pred_check
      _
    $region7: #{tpu_custom_call.1} parent=1 // pred_check_branch
      %23 = sbr.rel (0) target = $region9
    $region8: #{tpu_custom_call.1} parent=1 // pred_region
      _
    $region9: #{tpu_custom_call.1} parent=1 // pred_fallthru
      _
    // Predicated region
    $region10: #{tpu_custom_call.1} parent=1 // pred_check
      _
    $region11: #{tpu_custom_call.1} parent=1 // pred_check_branch
      %25 = sbr.rel (0) target = $region13
    $region12: #{tpu_custom_call.1} parent=1 // pred_region
      %s27 = ssub.s32 256, 256
      %28 = vsyncadd [#allocation6], %s27
      %s30 = sshll.u32 [#allocation5], 4
      %s31 = int_to_ptr.vmem [resolvable:$true] %s30
      %33 = dma.hbm_to_vmem [thread:$0]  %s2, 256, %s31, [#allocation6]
    $region13: #{tpu_custom_call.1} parent=1 // pred_fallthru
      _
    // Predicated region
    $region14: #{tpu_custom_call.1} parent=1 // pred_check
      _
    $region15: #{tpu_custom_call.1} parent=1 // pred_check_branch
      %35 = sbr.rel (0) target = $region17
    $region16: #{tpu_custom_call.1} parent=1 // pred_region
      %s37 = ssub.s32 256, 256
      %38 = vsyncadd [#allocation6], %s37
      %s40 = sshll.u32 [#allocation7], 4
      %s41 = int_to_ptr.vmem [resolvable:$true] %s40
      %43 = dma.hbm_to_vmem [thread:$0]  %s3, 256, %s41, [#allocation6]
    $region17: #{tpu_custom_call.1} parent=1 // pred_fallthru
      _
    // Predicated region
    $region18: #{tpu_custom_call.1} parent=1 // pred_check
      _
    $region19: #{tpu_custom_call.1} parent=1 // pred_check_branch
      %45 = sbr.rel (0) target = $region21
    $region20: #{tpu_custom_call.1} parent=1 // pred_region
      %46 = dma.done [#allocation3], 32
    $region21: #{tpu_custom_call.1} parent=1 // pred_fallthru
      _
    // Predicated region
    $region22: #{tpu_custom_call.1} parent=1 // pred_check
      _
    $region23: #{tpu_custom_call.1} parent=1 // pred_check_branch
      %48 = sbr.rel (0) target = $region25
    $region24: #{tpu_custom_call.1} parent=1 // pred_region
      %49 = dma.done [#allocation6], 256
    $region25: #{tpu_custom_call.1} parent=1 // pred_fallthru
      _
    // Predicated region
    $region26: #{tpu_custom_call.1} parent=1 // pred_check
      _
    $region27: #{tpu_custom_call.1} parent=1 // pred_check_branch
      %51 = sbr.rel (0) target = $region29
    $region28: #{tpu_custom_call.1} parent=1 // pred_region
      %52 = dma.done [#allocation6], 256
    $region29: #{tpu_custom_call.1} parent=1 // pred_fallthru
      _
    %v53 = vld [vmem:[#allocation2] sm:$0x3]
    %v55 = vlaneseq
    %v56 = vshrl.u32 %v55, 7
    %v57 = vsub.s32 0, %v56
    %v58 = vrot.slane %v53, %v57
    %v59 = vlaneseq
    %v60 = vshrl.u32 %v59, 7
    %v61 = vsub.s32 1, %v60
    %v62 = vrot.slane %v53, %v61
    %v65 = vld [vmem:[%s1] sm:$0x3]
    %v67 = vlaneseq
    %v68 = vshrl.u32 %v67, 7
    %v69 = vsub.s32 0, %v68
    %v70 = vrot.slane %v65, %v69
    %v71 = vlaneseq
    %v72 = vshrl.u32 %v71, 7
    %v73 = vsub.s32 1, %v72
    %v74 = vrot.slane %v65, %v73
    %s77 = smul.u32 0, 2
    %s78 = smul.addr %s77, 8
    %s79 = scalar_lea.vmem [#allocation5], %s78
    %v80 = vld [vmem:[%s79] sm:$0xff]
    %v81 = vld [vmem:[%s79 + $0x8] sm:$0xff]
    %s82 = smul.addr %s77, 8
    %s83 = scalar_lea.vmem [#allocation7], %s82
    %v84 = vld [vmem:[%s83] sm:$0xff]
    %v85 = vld [vmem:[%s83 + $0x8] sm:$0xff]
    %86 = vrot.lane.b32.xlu0 %v80, 127
    %v87 = vpop.permute.xlu0 %86
    %88 = vrot.lane.b32.xlu0 %v81, 127
    %v89 = vpop.permute.xlu0 %88
    %v90 = vlaneseq
    %v91 = vand.u32 %v90, 127
    %vm92 = vcmp.lt.s32.totalorder %v91, 127
    %v93 = vsel %vm92, %v87, %v89
    %v94 = vsel %vm92, %v89, %v87
    %v95 = vmul.f32 %v93, %v58
    %v96 = vmul.f32 %v94, %v62
    %97 = vrot.lane.b32.xlu0 %v84, 127
    %v98 = vpop.permute.xlu0 %97
    %99 = vrot.lane.b32.xlu0 %v85, 127
    %v100 = vpop.permute.xlu0 %99
    %v101 = vsel %vm92, %v98, %v100
    %v102 = vsel %vm92, %v100, %v98
    %v103 = vmul.f32 %v101, %v58
    %v104 = vmul.f32 %v102, %v62
    %105 = vrot.lane.b32.xlu0 %v80, 112
    %v106 = vpop.permute.xlu0 %105
    %107 = vrot.lane.b32.xlu0 %v81, 112
    %v108 = vpop.permute.xlu0 %107
    %vm109 = vcmp.lt.s32.totalorder %v91, 112
    %v110 = vsel %vm109, %v106, %v108
    %v111 = vsel %vm109, %v108, %v106
    %v112 = vmul.f32 %v110, %v70
    %v113 = vmul.f32 %v111, %v74
    %114 = vrot.lane.b32.xlu0 %v84, 112
    %v115 = vpop.permute.xlu0 %114
    %116 = vrot.lane.b32.xlu0 %v85, 112
    %v117 = vpop.permute.xlu0 %116
    %v118 = vsel %vm109, %v115, %v117
    %v119 = vsel %vm109, %v117, %v115
    %v120 = vmul.f32 %v118, %v70
    %v121 = vmul.f32 %v119, %v74
    %v122 = vsub.f32 %v95, %v80
    %v123 = vsub.f32 %v96, %v81
    %v124 = vand.u32 2147483647, %v122
    %v125 = vand.u32 2147483647, %v123
    %v126 = vsub.f32 %v103, %v84
    %v127 = vsub.f32 %v104, %v85
    %v128 = vand.u32 2147483647, %v126
    %v129 = vand.u32 2147483647, %v127
    %v130 = vsub.f32 %v124, %v128
    %v131 = vsub.f32 %v125, %v129
    %v132 = vand.u32 2147483647, %v130
    %v133 = vand.u32 2147483647, %v131
    %v134 = vadd.f32 %v80, %v112
    %v135 = vadd.f32 %v81, %v113
    %v136 = vand.u32 2147483647, %v134
    %v137 = vand.u32 2147483647, %v135
    %v138 = vadd.f32 %v84, %v120
    %v139 = vadd.f32 %v85, %v121
    %v140 = vand.u32 2147483647, %v138
    %v141 = vand.u32 2147483647, %v139
    %v142 = vsub.f32 %v136, %v140
    %v143 = vsub.f32 %v137, %v141
    %v144 = vand.u32 2147483647, %v142
    %v145 = vand.u32 2147483647, %v143
    %v146 = vadd.f32 %v132, %v144
    %v147 = vadd.f32 %v133, %v145
    %v148 = vadd.f32 %v146, %v147
    %v149 = vadd.f32 %v148, 0.0
    %150 = vst [vmem:[#allocation8] sm:$0xff] %v149
    // Predicated region
    $region30: #{tpu_custom_call.1} parent=1 // pred_check
      _
    $region31: #{tpu_custom_call.1} parent=1 // pred_check_branch
      %152 = sbr.rel (0) target = $region33
    $region32: #{tpu_custom_call.1} parent=1 // pred_region
      %s154 = ssub.s32 128, 128
      %155 = vsyncadd [#allocation4], %s154
      %s157 = sshll.u32 [#allocation8], 4
      %s158 = int_to_ptr.vmem [resolvable:$true] %s157
      %160 = dma.vmem_to_hbm [thread:$0]  %s158, 128, %s4, [#allocation4]
    $region33: #{tpu_custom_call.1} parent=1 // pred_fallthru
      _
    // Predicated region
    $region34: #{tpu_custom_call.1} parent=1 // pred_check
      _
    $region35: #{tpu_custom_call.1} parent=1 // pred_check_branch
      %162 = sbr.rel (0) target = $region37
    $region36: #{tpu_custom_call.1} parent=1 // pred_region
      %163 = dma.done [#allocation4], 128
    $region37: #{tpu_custom_call.1} parent=1 // pred_fallthru
      _
    %164 = vsyncpa [#allocation3], 1
    %165 = vsyncpa [#allocation6], 1
    %166 = vsyncpa [#allocation4], 1

</llo_original>
